<compile_context>
chip_gen: v7x
topology: tpu7x:2x2x1
jax: 0.10.0
libtpu: 0.0.40
codegen_flags: <defaults>
</compile_context>

<pallas_src>
import jax
import jax.numpy as jnp
from jax.experimental import pallas as pl
from jax.experimental.pallas import tpu as pltpu

_LANE = 128
_SUBLANE = 8
_BN_EPS = 1e-5


def _round_up(x, m):
    return ((x + m - 1) // m) * m


def _vmem_budget_bytes():
    # Generation-aware VMEM budget: ~80% of physical capacity
    # (v5e/v6e 128 MiB -> ~102 MiB, v7x 64 MiB -> ~51 MiB), leaving headroom
    # for Mosaic internal scratch.
    try:
        cap = int(pltpu.get_tpu_info().vmem_capacity_bytes)
    except Exception:
        cap = 64 * 1024 * 1024  # conservative fallback (v7x per-TC)
    return int(cap * 0.8)


def _pick_batch_block(B, step_bytes, budget):
    bb = 1
    for cand in range(1, min(B, 32) + 1):
        if B % cand == 0 and step_bytes(cand) <= budget:
            bb = cand
    # Keep >= 2 grid steps whenever possible so a megacore part (v7x, 2 TCs)
    # can split the "parallel" batch axis across cores.
    if B >= 2 and B // bb < 2:
        for cand in range(bb, 0, -1):
            if B % cand == 0 and B // cand >= 2:
                bb = cand
                break
    return bb


# ----------------------------------------------------------------------------
# Kernel 1: fused q/k/v projection + spatial self-attention + residual
#           + per-grid-step partial BatchNorm statistics.
# Grid: (B // Bb,), "parallel" (all outputs, incl. stats, are per-block).
# ----------------------------------------------------------------------------
def _make_attn_kernel(*, N, Np, C, Bb, k_off, v_off, emit_attn, compute_dtype):
    def kernel(gamma_ref, x_ref, w_ref, b_ref, *out_refs):
        if emit_attn:
            y_ref, attn_ref, sum_ref, ssq_ref = out_refs
        else:
            y_ref, sum_ref, ssq_ref = out_refs

        gamma = gamma_ref[0]
        w = w_ref[...]                 # (O, C) f32 stacked & zero-padded Wq/Wk/Wv
        bias = b_ref[...]              # (O, 1) f32

        if Np != N:
            col = jax.lax.broadcasted_iota(jnp.int32, (1, Np), 1)
            valid = col < N            # (1, Np) key/column-validity mask

        def body(bb, carry):
            s_acc, ss_acc = carry
            x = x_ref[bb]              # (C, Np) f32

            # One fused projection matmul: (O, C) @ (C, Np) -> (O, Np).
            qkv = jnp.dot(w, x, preferred_element_type=jnp.float32) + bias

            # Sublane-aligned (8-row) slices; the extra rows are exactly zero
            # (zero weight + zero bias) so they contribute 0 to the channel
            # contraction -> no relayout before the MXU.
            q = qkv[0:k_off]           # (k_off, Np)
            k = qkv[k_off:v_off]       # (v_off - k_off, Np)
            v = qkv[v_off:]            # (C, Np)

            # energy[m, n] = sum_c q[c, m] * k[c, n]   (transpose-free)
            energy = jax.lax.dot_general(
                q.astype(compute_dtype), k.astype(compute_dtype),
                (((0,), (0,)), ((), ())),
                preferred_element_type=jnp.float32)          # (Np, Np) f32
            if Np != N:
                energy = jnp.where(valid, energy, -1e30)

            # softmax(dim=-1), kept in f32 (v5e VPU/EUP have no bf16).
            m = jnp.max(energy, axis=-1, keepdims=True)
            e = jnp.exp(energy - m)
            denom = jnp.sum(e, axis=-1, keepdims=True)
            attn = e * pl.reciprocal(denom, approx=True)

            # out[c, m] = sum_n v[c, n] * attn[m, n]   (== v @ attn^T)
            out = jax.lax.dot_general(
                v.astype(compute_dtype), attn.astype(compute_dtype),
                (((1,), (1,)), ((), ())),
                preferred_element_type=jnp.float32)          # (C, Np) f32

            y = gamma * out + x
            if Np != N:
                y = jnp.where(valid, y, 0.0)   # zero padded columns for BN stats
            y_ref[bb] = y
            if emit_attn:
                # Write the cropped (N, N) map directly (no post-kernel slice).
                attn_ref[bb] = attn[:N, :N].astype(attn_ref.dtype)

            s_acc = s_acc + jnp.sum(y, axis=-1, keepdims=True)
            ss_acc = ss_acc + jnp.sum(y * y, axis=-1, keepdims=True)
            return s_acc, ss_acc

        # fori_loop (not a static unroll) bounds the live set to one image.
        init = (jnp.zeros((C, 1), jnp.float32), jnp.zeros((C, 1), jnp.float32))
        s_acc, ss_acc = jax.lax.fori_loop(0, Bb, body, init)

        # Per-grid-step partial BN statistics -> batch axis stays "parallel".
        sum_ref[...] = s_acc[None]
        ssq_ref[...] = ss_acc[None]

    return kernel


# ----------------------------------------------------------------------------
# Kernel 2: BatchNorm normalize pass, batch-tiled, writes unpadded (B, C, N).
# ----------------------------------------------------------------------------
def _make_bn_kernel(*, N, count):
    inv_count = 1.0 / float(count)

    def kernel(y_ref, psum_ref, pssq_ref, w_ref, b_ref, o_ref):
        ch_sum = jnp.sum(psum_ref[...], axis=0)              # (C, 1)
        ch_ssq = jnp.sum(pssq_ref[...], axis=0)              # (C, 1)
        mean = ch_sum * inv_count
        # Biased variance; clamp >= 0 for near-constant channels.
        var = jnp.maximum(ch_ssq * inv_count - mean * mean, 0.0)
        inv = jax.lax.rsqrt(var + _BN_EPS)
        scale = inv * w_ref[...]                             # (C, 1)
        shift = b_ref[...] - mean * scale                    # (C, 1)
        y = y_ref[...]                                       # (Bb2, C, Np)
        o_ref[...] = y[:, :, :N] * scale[None] + shift[None]

    return kernel


# ----------------------------------------------------------------------------
# Wrapper
# ----------------------------------------------------------------------------
def self_attention_forward(x, params, *, return_attention=False,
                           compute_dtype=jnp.bfloat16, attn_dtype=jnp.bfloat16):
    B, C, H, W = x.shape
    N = H * W
    Np = _round_up(N, _LANE)
    Cq = params["wq"].shape[0]
    f32 = jnp.float32

    # Stack Wq / Wk / Wv (and biases) at sublane-aligned row offsets so the
    # in-kernel q/k/v slices are 8-row aligned; padded rows are zero.
    k_off = _round_up(Cq, _SUBLANE)
    v_off = 2 * k_off
    O = v_off + C

    w = jnp.zeros((O, C), f32)
    w = w.at[0:Cq].set(params["wq"].astype(f32))
    w = w.at[k_off:k_off + Cq].set(params["wk"].astype(f32))
    w = w.at[v_off:].set(params["wv"].astype(f32))
    b = jnp.zeros((O, 1), f32)
    b = b.at[0:Cq].set(params["bq"].reshape(Cq, 1).astype(f32))
    b = b.at[k_off:k_off + Cq].set(params["bk"].reshape(Cq, 1).astype(f32))
    b = b.at[v_off:].set(params["bv"].reshape(C, 1).astype(f32))

    x3 = x.reshape(B, C, N).astype(f32)
    if Np != N:
        x3 = jnp.pad(x3, ((0, 0), (0, 0), (0, Np - N)))
    gamma = params["gamma"].reshape(1).astype(f32)

    budget = _vmem_budget_bytes()
    attn_bytes = jnp.dtype(attn_dtype).itemsize

    # Per-grid-step VMEM footprint: x2 = pipeline double-buffering of I/O
    # blocks; intermediates counted once (fori_loop bounds them to one image).
    def attn_step_bytes(bb):
        io = bb * C * Np * 4 * 2                    # x in
        io += bb * C * Np * 4 * 2                   # y out
        if return_attention:
            io += bb * N * N * attn_bytes * 2       # attn out
        wts = (O * C + O) * 4 * 2
        interm = (O * Np + 3 * Np * Np + 2 * C * Np) * 4
        stats = 2 * C * 4 * 2
        return io + wts + interm + stats

    Bb = _pick_batch_block(B, attn_step_bytes, budget)
    G = B // Bb
    # TODO(synk): for large N (energy/attn working set ~3*Np^2*4 B; tighter on
    # v7x's 64 MiB VMEM) switch to a KV-tiled flash-style online softmax.

    kernel1 = _make_attn_kernel(
        N=N, Np=Np, C=C, Bb=Bb, k_off=k_off, v_off=v_off,
        emit_attn=return_attention, compute_dtype=compute_dtype)

    out_shapes = [jax.ShapeDtypeStruct((B, C, Np), f32)]
    out_specs = [pl.BlockSpec((Bb, C, Np), lambda i: (i, 0, 0))]
    if return_attention:
        out_shapes.append(jax.ShapeDtypeStruct((B, N, N), attn_dtype))
        out_specs.append(pl.BlockSpec((Bb, N, N), lambda i: (i, 0, 0)))
    out_shapes += [jax.ShapeDtypeStruct((G, C, 1), f32),
                   jax.ShapeDtypeStruct((G, C, 1), f32)]
    out_specs += [pl.BlockSpec((1, C, 1), lambda i: (i, 0, 0)),
                  pl.BlockSpec((1, C, 1), lambda i: (i, 0, 0))]

    results = pl.pallas_call(
        kernel1,
        out_shape=tuple(out_shapes),
        grid=(G,),
        in_specs=[
            pl.BlockSpec(memory_space=pltpu.MemorySpace.SMEM),   # gamma scalar
            pl.BlockSpec((Bb, C, Np), lambda i: (i, 0, 0)),      # x
            pl.BlockSpec((O, C), lambda i: (0, 0)),              # stacked W
            pl.BlockSpec((O, 1), lambda i: (0, 0)),              # stacked bias
        ],
        out_specs=tuple(out_specs),
        compiler_params=pltpu.CompilerParams(
            dimension_semantics=("parallel",),   # per-block stats -> megacore-safe
            vmem_limit_bytes=budget),
    )(gamma, x3, w, b)

    if return_attention:
        y, attn_out, psum, pssq = results
    else:
        y, psum, pssq = results
        attn_out = None

    # --- pass 2: BN normalize with the fused partial statistics ---
    def bn_step_bytes(bb):
        return (bb * C * Np * 4 * 2 + bb * C * N * 4 * 2
                + 2 * G * C * 4 * 2 + 2 * C * 4 * 2)

    Bb2 = _pick_batch_block(B, bn_step_bytes, budget)

    bn_kernel = _make_bn_kernel(N=N, count=B * N)
    out = pl.pallas_call(
        bn_kernel,
        out_shape=jax.ShapeDtypeStruct((B, C, N), f32),
        grid=(B // Bb2,),
        in_specs=[
            pl.BlockSpec((Bb2, C, Np), lambda i: (i, 0, 0)),     # y (padded)
            pl.BlockSpec((G, C, 1), lambda i: (0, 0, 0)),        # partial sums
            pl.BlockSpec((G, C, 1), lambda i: (0, 0, 0)),        # partial sum-sq
            pl.BlockSpec((C, 1), lambda i: (0, 0)),              # bn weight
            pl.BlockSpec((C, 1), lambda i: (0, 0)),              # bn bias
        ],
        out_specs=pl.BlockSpec((Bb2, C, N), lambda i: (i, 0, 0)),
        compiler_params=pltpu.CompilerParams(
            dimension_semantics=("parallel",),
            vmem_limit_bytes=budget),
    )(y, psum, pssq,
      params["bn_w"].reshape(C, 1).astype(f32),
      params["bn_b"].reshape(C, 1).astype(f32))

    out = out.reshape(B, C, H, W)
    if return_attention:
        return out, attn_out
    return out


# ----------------------------------------------------------------------------
# Pure-JAX reference (for sanity check)
# ----------------------------------------------------------------------------
def reference_forward(x, params):
    B, C, H, W = x.shape
    N = H * W
    x3 = x.reshape(B, C, N)
    q = jnp.einsum("oc,bcn->bon", params["wq"], x3) + params["bq"][None, :, :]
    k = jnp.einsum("oc,bcn->bon", params["wk"], x3) + params["bk"][None, :, :]
    v = jnp.einsum("oc,bcn->bon", params["wv"], x3) + params["bv"][None, :, :]
    energy = jnp.einsum("bcm,bcn->bmn", q, k)
    attn = jax.nn.softmax(energy, axis=-1)
    out = jnp.einsum("bcn,bmn->bcm", v, attn)
    y = params["gamma"] * out + x3
    mean = jnp.mean(y, axis=(0, 2), keepdims=True)
    var = jnp.mean((y - mean) ** 2, axis=(0, 2), keepdims=True)
    yn = (y - mean) * jax.lax.rsqrt(var + _BN_EPS)
    yn = yn * params["bn_w"][None, :, None] + params["bn_b"][None, :, None]
    return yn.reshape(B, C, H, W), attn


if __name__ == "__main__":
    B, C, H, W = 2, 16, 8, 8          # in_dim = 16 -> query/key channels = 2
    Cq = C // 8

    key = jax.random.PRNGKey(0)
    kx, kq, kk, kv, kbq, kbk, kbv, kx2 = jax.random.split(key, 8)

    x = jax.random.normal(kx, (B, C, H, W), dtype=jnp.float32)

    params = {
        "wq": 0.1 * jax.random.normal(kq, (Cq, C), dtype=jnp.float32),
        "bq": 0.1 * jax.random.normal(kbq, (Cq, 1), dtype=jnp.float32),
        "wk": 0.1 * jax.random.normal(kk, (Cq, C), dtype=jnp.float32),
        "bk": 0.1 * jax.random.normal(kbk, (Cq, 1), dtype=jnp.float32),
        "wv": 0.1 * jax.random.normal(kv, (C, C), dtype=jnp.float32),
        "bv": 0.1 * jax.random.normal(kbv, (C, 1), dtype=jnp.float32),
        "gamma": jnp.array(0.1, dtype=jnp.float32),
        "bn_w": jnp.ones((C,), dtype=jnp.float32),
        "bn_b": jnp.zeros((C,), dtype=jnp.float32),
    }

    ref_out, ref_attn = reference_forward(x, params)

    # Default path: bf16 MXU operands (f32 accumulation), no attention
    # writeback (matches the PyTorch module's return).
    out = self_attention_forward(x, params)
    out = jax.block_until_ready(out)
    assert out.shape == (B, C, H, W)
    assert jnp.allclose(out, ref_out, atol=5e-2, rtol=5e-2)

    # f32 MXU operands + f32 attention map (tightest check).
    out32, attn32 = self_attention_forward(
        x, params, return_attention=True,
        compute_dtype=jnp.float32, attn_dtype=jnp.float32)
    out32 = jax.block_until_ready(out32)
    attn32 = jax.block_until_ready(attn32)
    assert attn32.shape == (B, H * W, H * W)
    assert jnp.allclose(out32, ref_out, atol=1e-2, rtol=1e-2)
    assert jnp.allclose(attn32, ref_attn, atol=5e-3, rtol=2e-2)

    # bf16 fast path with bf16 attention writeback (halved HBM traffic).
    out16, attn16 = self_attention_forward(x, params, return_attention=True)
    out16 = jax.block_until_ready(out16)
    assert jnp.allclose(out16, ref_out, atol=5e-2, rtol=5e-2)
    assert jnp.allclose(attn16.astype(jnp.float32), ref_attn, atol=2e-2, rtol=5e-2)

    # Second shape: N is an exact lane multiple (no-padding path, G = 2).
    x2 = jax.random.normal(kx2, (2, C, 16, 8), dtype=jnp.float32)
    ref_out2, _ = reference_forward(x2, params)
    out2 = self_attention_forward(x2, params)
    out2 = jax.block_until_ready(out2)
    assert jnp.allclose(out2, ref_out2, atol=5e-2, rtol=5e-2)

    print("KERNEL_OK")
</pallas_src>

<mosaic_0001>
module attributes {stable_mosaic.version = 11 : i64} {
  func.func @kernel(%arg0: i32, %arg1: memref<1xf32, #tpu.memory_space<smem>>, %arg2: memref<1x16x128xf32, #tpu.memory_space<vmem>>, %arg3: memref<32x16xf32, #tpu.memory_space<vmem>>, %arg4: memref<32x1xf32, #tpu.memory_space<vmem>>, %arg5: memref<1x16x128xf32, #tpu.memory_space<vmem>>, %arg6: memref<1x16x1xf32, #tpu.memory_space<vmem>>, %arg7: memref<1x16x1xf32, #tpu.memory_space<vmem>>) attributes {dimension_semantics = [#tpu.dimension_semantics<parallel>], iteration_bounds = array<i64: 2>, scalar_prefetch = 0 : i64, scratch_operands = 0 : i64, tpu.core_type = #tpu.core_type<tc>, window_params = [{transform_indices = @transform_0, window_bounds = array<i64: 1>}, {transform_indices = @transform_1, window_bounds = array<i64: 1, 16, 128>}, {pipeline_mode = #tpu.pipeline_mode<synchronous>, transform_indices = @transform_2, window_bounds = array<i64: 32, 16>}, {pipeline_mode = #tpu.pipeline_mode<synchronous>, transform_indices = @transform_3, window_bounds = array<i64: 32, 1>}, {transform_indices = @transform_4, window_bounds = array<i64: 1, 16, 128>}, {transform_indices = @transform_5, window_bounds = array<i64: 1, 16, 1>}, {transform_indices = @transform_6, window_bounds = array<i64: 1, 16, 1>}]} {
    %c0 = arith.constant 0 : index
    %0 = memref.load %arg1[%c0] : memref<1xf32, #tpu.memory_space<smem>>
    %c0_0 = arith.constant 0 : index
    %c0_1 = arith.constant 0 : index
    %1 = vector.load %arg3[%c0_0, %c0_1] : memref<32x16xf32, #tpu.memory_space<vmem>>, vector<32x16xf32>
    %c0_2 = arith.constant 0 : index
    %c0_3 = arith.constant 0 : index
    %2 = vector.load %arg4[%c0_2, %c0_3] : memref<32x1xf32, #tpu.memory_space<vmem>>, vector<32x1xf32>
    %3 = tpu.iota {dimensions = array<i32: 1>} : vector<1x128xi32>
    %c64_i32 = arith.constant 64 : i32
    %4 = vector.broadcast %c64_i32 : i32 to vector<1x128xi32>
    %5 = arith.cmpi slt, %3, %4 : vector<1x128xi32>
    %cst = arith.constant 0.000000e+00 : f32
    %6 = vector.broadcast %cst : f32 to vector<16x1xf32>
    %cst_4 = arith.constant 0.000000e+00 : f32
    %7 = vector.broadcast %cst_4 : f32 to vector<16x1xf32>
    %c0_i32 = arith.constant 0 : i32
    %8 = arith.index_cast %c0_i32 : i32 to index
    %c0_5 = arith.constant 0 : index
    %c0_6 = arith.constant 0 : index
    %9 = vector.load %arg2[%8, %c0_5, %c0_6] : memref<1x16x128xf32, #tpu.memory_space<vmem>>, vector<1x16x128xf32>
    %10 = vector.shape_cast %9 : vector<1x16x128xf32> to vector<16x128xf32>
    %cst_7 = arith.constant dense<0.000000e+00> : vector<32x128xf32>
    %11 = tpu.matmul %1, %10, %cst_7 {dimension_numbers = #tpu.dot_dimension_numbers<[1], [0], [0], [1], [0, 0, 1, 1], [], []>} : vector<32x16xf32>, vector<16x128xf32>, vector<32x128xf32> -> vector<32x128xf32>
    %12 = vector.broadcast %2 : vector<32x1xf32> to vector<32x128xf32>
    %13 = arith.addf %11, %12 : vector<32x128xf32>
    %14 = vector.extract_strided_slice %13 {offsets = [0, 0], sizes = [8, 128], strides = [1, 1]} : vector<32x128xf32> to vector<8x128xf32>
    %15 = vector.extract_strided_slice %13 {offsets = [8, 0], sizes = [8, 128], strides = [1, 1]} : vector<32x128xf32> to vector<8x128xf32>
    %16 = vector.extract_strided_slice %13 {offsets = [16, 0], sizes = [16, 128], strides = [1, 1]} : vector<32x128xf32> to vector<16x128xf32>
    %17 = arith.truncf %14 : vector<8x128xf32> to vector<8x128xbf16>
    %18 = arith.truncf %15 : vector<8x128xf32> to vector<8x128xbf16>
    %cst_8 = arith.constant dense<0.000000e+00> : vector<128x128xf32>
    %19 = tpu.matmul %17, %18, %cst_8 {dimension_numbers = #tpu.dot_dimension_numbers<[0], [0], [1], [1], [0, 1, 1, 1], [], []>} : vector<8x128xbf16>, vector<8x128xbf16>, vector<128x128xf32> -> vector<128x128xf32>
    %cst_9 = arith.constant -1.000000e+30 : f32
    %20 = vector.shape_cast %5 : vector<1x128xi1> to vector<1x128xi1>
    %21 = vector.broadcast %20 : vector<1x128xi1> to vector<128x128xi1>
    %22 = vector.broadcast %cst_9 : f32 to vector<128x128xf32>
    %23 = arith.select %21, %19, %22 : vector<128x128xi1>, vector<128x128xf32>
    %cst_10 = arith.constant dense<0xFF800000> : vector<128xf32>
    %24 = vector.multi_reduction <maximumf>, %23, %cst_10 [1] : vector<128x128xf32> to vector<128xf32>
    %25 = vector.shape_cast %24 : vector<128xf32> to vector<128x1xf32>
    %26 = vector.broadcast %25 : vector<128x1xf32> to vector<128x128xf32>
    %27 = arith.subf %23, %26 : vector<128x128xf32>
    %28 = math.exp %27 : vector<128x128xf32>
    %cst_11 = arith.constant dense<0.000000e+00> : vector<128xf32>
    %29 = vector.multi_reduction <add>, %28, %cst_11 [1] : vector<128x128xf32> to vector<128xf32>
    %30 = vector.shape_cast %29 : vector<128xf32> to vector<128x1xf32>
    %31 = tpu.reciprocal %30 {approx = true} : vector<128x1xf32> -> vector<128x1xf32>
    %32 = vector.broadcast %31 : vector<128x1xf32> to vector<128x128xf32>
    %33 = arith.mulf %28, %32 : vector<128x128xf32>
    %34 = arith.truncf %16 : vector<16x128xf32> to vector<16x128xbf16>
    %35 = arith.truncf %33 : vector<128x128xf32> to vector<128x128xbf16>
    %cst_12 = arith.constant dense<0.000000e+00> : vector<16x128xf32>
    %36 = tpu.matmul %34, %35, %cst_12 {dimension_numbers = #tpu.dot_dimension_numbers<[1], [1], [0], [0], [0, 0, 1, 0], [], []>} : vector<16x128xbf16>, vector<128x128xbf16>, vector<16x128xf32> -> vector<16x128xf32>
    %37 = vector.broadcast %0 : f32 to vector<16x128xf32>
    %38 = arith.mulf %37, %36 : vector<16x128xf32>
    %39 = arith.addf %38, %10 : vector<16x128xf32>
    %cst_13 = arith.constant 0.000000e+00 : f32
    %40 = vector.shape_cast %5 : vector<1x128xi1> to vector<1x128xi1>
    %41 = vector.broadcast %40 : vector<1x128xi1> to vector<16x128xi1>
    %42 = vector.broadcast %cst_13 : f32 to vector<16x128xf32>
    %43 = arith.select %41, %39, %42 : vector<16x128xi1>, vector<16x128xf32>
    %44 = arith.index_cast %c0_i32 : i32 to index
    %c0_14 = arith.constant 0 : index
    %c0_15 = arith.constant 0 : index
    %45 = vector.load %arg5[%44, %c0_14, %c0_15] : memref<1x16x128xf32, #tpu.memory_space<vmem>>, vector<1x16x128xf32>
    %46 = vector.shape_cast %45 : vector<1x16x128xf32> to vector<16x128xf32>
    %47 = vector.shape_cast %43 : vector<16x128xf32> to vector<1x16x128xf32>
    tpu.vector_store %arg5[%44, %c0_14, %c0_15], %47 {strides = array<i32>} : memref<1x16x128xf32, #tpu.memory_space<vmem>>, vector<1x16x128xf32>,
    %cst_16 = arith.constant dense<0.000000e+00> : vector<16xf32>
    %48 = vector.multi_reduction <add>, %43, %cst_16 [1] : vector<16x128xf32> to vector<16xf32>
    %49 = vector.shape_cast %48 : vector<16xf32> to vector<16x1xf32>
    %50 = arith.addf %6, %49 : vector<16x1xf32>
    %51 = arith.mulf %43, %43 : vector<16x128xf32>
    %cst_17 = arith.constant dense<0.000000e+00> : vector<16xf32>
    %52 = vector.multi_reduction <add>, %51, %cst_17 [1] : vector<16x128xf32> to vector<16xf32>
    %53 = vector.shape_cast %52 : vector<16xf32> to vector<16x1xf32>
    %54 = arith.addf %7, %53 : vector<16x1xf32>
    %c1_i32 = arith.constant 1 : i32
    %55 = vector.shape_cast %50 : vector<16x1xf32> to vector<1x16x1xf32>
    %c0_18 = arith.constant 0 : index
    %c0_19 = arith.constant 0 : index
    %c0_20 = arith.constant 0 : index
    %56 = vector.load %arg6[%c0_18, %c0_19, %c0_20] : memref<1x16x1xf32, #tpu.memory_space<vmem>>, vector<1x16x1xf32>
    tpu.vector_store %arg6[%c0_18, %c0_19, %c0_20], %55 {strides = array<i32>} : memref<1x16x1xf32, #tpu.memory_space<vmem>>, vector<1x16x1xf32>,
    %57 = vector.shape_cast %54 : vector<16x1xf32> to vector<1x16x1xf32>
    %c0_21 = arith.constant 0 : index
    %c0_22 = arith.constant 0 : index
    %c0_23 = arith.constant 0 : index
    %58 = vector.load %arg7[%c0_21, %c0_22, %c0_23] : memref<1x16x1xf32, #tpu.memory_space<vmem>>, vector<1x16x1xf32>
    tpu.vector_store %arg7[%c0_21, %c0_22, %c0_23], %57 {strides = array<i32>} : memref<1x16x1xf32, #tpu.memory_space<vmem>>, vector<1x16x1xf32>,
    return
  }
  func.func @transform_0(%arg0: i32) -> i32 {
    %c0_i32 = arith.constant 0 : i32
    %c0_i32_0 = arith.constant 0 : i32
    return %c0_i32 : i32
  }
  func.func @transform_1(%arg0: i32) -> (i32, i32, i32) {
    %c0_i32 = arith.constant 0 : i32
    %c0_i32_0 = arith.constant 0 : i32
    %c0_i32_1 = arith.constant 0 : i32
    return %arg0, %c0_i32, %c0_i32_0 : i32, i32, i32
  }
  func.func @transform_2(%arg0: i32) -> (i32, i32) {
    %c0_i32 = arith.constant 0 : i32
    %c0_i32_0 = arith.constant 0 : i32
    %c0_i32_1 = arith.constant 0 : i32
    return %c0_i32, %c0_i32_0 : i32, i32
  }
  func.func @transform_3(%arg0: i32) -> (i32, i32) {
    %c0_i32 = arith.constant 0 : i32
    %c0_i32_0 = arith.constant 0 : i32
    %c0_i32_1 = arith.constant 0 : i32
    return %c0_i32, %c0_i32_0 : i32, i32
  }
  func.func @transform_4(%arg0: i32) -> (i32, i32, i32) {
    %c0_i32 = arith.constant 0 : i32
    %c0_i32_0 = arith.constant 0 : i32
    %c0_i32_1 = arith.constant 0 : i32
    return %arg0, %c0_i32, %c0_i32_0 : i32, i32, i32
  }
  func.func @transform_5(%arg0: i32) -> (i32, i32, i32) {
    %c0_i32 = arith.constant 0 : i32
    %c0_i32_0 = arith.constant 0 : i32
    %c0_i32_1 = arith.constant 0 : i32
    return %arg0, %c0_i32, %c0_i32_0 : i32, i32, i32
  }
  func.func @transform_6(%arg0: i32) -> (i32, i32, i32) {
    %c0_i32 = arith.constant 0 : i32
    %c0_i32_0 = arith.constant 0 : i32
    %c0_i32_1 = arith.constant 0 : i32
    return %arg0, %c0_i32, %c0_i32_0 : i32, i32, i32
  }
}

</mosaic_0001>

<llo_original>
// kernel: tpu_custom_call.1
$region0: #{tpu_custom_call.1}
  #allocation0 [shape = 'u32[]', space=smem, size = 0x4, offset = 0x4, fixed_abs, tag = 'smem constant byte address 0x4 - core index']
  #allocation1 [shape = 'u32[144,128]{1,0:T(1,128)}', space=vmem, size = 0x12000, scoped, tag = 'internal scratch']
  #allocation2 [shape = 'f32[1]{0:T(128)S(6)}', space=smem, size = 0x200, scoped, tag = 'scoped memory for tpu_custom_call.1']
  %s0 = inlined_call_operand.<no memory space> [shape: f32[1], index: 0, kind: input, shape index: {}]
  %s1 = inlined_call_operand.vmem [shape: f32[2,16,128], index: 1, kind: input, shape index: {}]
  %s2 = inlined_call_operand.vmem [shape: f32[32,16], index: 2, kind: input, shape index: {}]
  %s3 = inlined_call_operand.vmem [shape: f32[32,1], index: 3, kind: input, shape index: {}]
  %s4 = inlined_call_operand.hbm [shape: f32[2,16,128], index: 4, kind: output, shape index: {0}]
  %s5 = inlined_call_operand.vmem [shape: f32[2,16,1], index: 5, kind: output, shape index: {1}]
  %s6 = inlined_call_operand.vmem [shape: f32[2,16,1], index: 6, kind: output, shape index: {2}]
  %7 = xla_tuple %s4, %s5, %s6
  %s8 = sld [smem:[#allocation0]]
  $region65: #{tpu_custom_call.1} parent=0
    _
  %s10 = ssub.s32 1, %s8
  %s11 = scalar_select 0, %s10, %s8
  %12 = sst [smem:[#allocation2]] %s0
  $region1: #{tpu_custom_call.1} parent=0
    #allocation3 [shape = 'u8[16384]{0}', space=vmem, size = 0x4000, scoped, tag = 'output window, operand 0']
    #allocation4 [shape = 's32[2]{0}', space=sflag, size = 0x8, scoped, tag = 'scoped memory for tpu_custom_call.1']
    %13 = vsyncpa [#allocation4], 0
    %s14 = scalar_lea.sflag [#allocation4], 1
    %15 = vsyncpa %s14, 0
    loop: start=0, step=1, limit=4
    $region2: #{tpu_custom_call.1} parent=1 // loop_pre_header
      _
    $region3: #{tpu_custom_call.1} parent=1 // loop_header
      %s17 = sphi 0, %s21
      %p18 = scmp.ge.s32.totalorder %s17, 4
      %s25 = sphi 0, %s25
      %s27 = sphi 0, %s25
      %s28 = sphi 0, %s27
      %s42 = sphi 0, %s28
      %s48 = sphi 0, %s50
      %s51 = sphi 0, %s48
      %s52 = sphi 0, %s51
      %s68 = sphi 0, %s52
      %s72 = sphi 0, %s72
      %s74 = sphi 0, %s72
      %s75 = sphi 0, %s74
      %s89 = sphi 0, %s75
      %s93 = sphi 0, %s93
      %s95 = sphi 0, %s93
      %s96 = sphi 0, %s95
      %s110 = sphi 0, %s96
      %s116 = sphi 0, %s118
      %s119 = sphi 0, %s116
      %s120 = sphi 0, %s119
      %s136 = sphi 0, %s120
      %s142 = sphi 0, %s144
      %s145 = sphi 0, %s142
      %s146 = sphi 0, %s145
      %s162 = sphi 0, %s146
      %s168 = sphi 0, %s170
      %s171 = sphi 0, %s168
      %s172 = sphi 0, %s171
      %s188 = sphi 0, %s172
    $region4: #{tpu_custom_call.1} parent=1 // loop_header_branch
      %20 = sbr.rel (%p18) target = $region8
    $region5: #{tpu_custom_call.1} parent=1 // loop_body
      %s22 = ssub.s32 %s17, 1
      %s23 = ssub.s32 %s17, 2
      %s24 = sadd.s32 %s17, 1
      %s26 = sadd.s32 %s25, 1
      %p29 = scmp.eq.s32.totalorder %s17, 1
      %p30 = scmp.ne.s32.totalorder %s25, %s27
      %p31 = scmp.eq.s32.totalorder %s17, 0
      %p32 = por %p30, %p31
      %p33 = scmp.ne.s32.totalorder %s25, %s27
      %p34 = scmp.eq.s32.totalorder %s22, 1
      %p35 = por %p33, %p34
      %p36 = scmp.ne.s32.totalorder %s27, %s28
      %p37 = scmp.eq.s32.totalorder %s22, 0
      %p38 = por %p36, %p37
      %p39 = scmp.ne.s32.totalorder %s27, %s28
      %p40 = scmp.eq.s32.totalorder %s23, 1
      %p41 = por %p39, %p40
      %p43 = scmp.ne.s32.totalorder %s28, %s42
      %p44 = scmp.eq.s32.totalorder %s23, 0
      %p45 = por %p43, %p44
      %s46 = ssub.s32 %s17, %s24
      %p47 = scmp.eq.s32.totalorder %s46, 0
      %s49 = sadd.s32 %s48, 1
      %s50 = scalar_select %p47, %s48, %s49
      %p53 = pneg %p47
      %p54 = scmp.eq.s32.totalorder %s17, 1
      %p55 = por %p53, %p54
      %p56 = scmp.ne.s32.totalorder %s48, %s51
      %p57 = scmp.eq.s32.totalorder %s17, 0
      %p58 = por %p56, %p57
      %p59 = scmp.ne.s32.totalorder %s48, %s51
      %p60 = scmp.eq.s32.totalorder %s22, 1
      %p61 = por %p59, %p60
      %p62 = scmp.ne.s32.totalorder %s51, %s52
      %p63 = scmp.eq.s32.totalorder %s22, 0
      %p64 = por %p62, %p63
      %p65 = scmp.ne.s32.totalorder %s51, %s52
      %p66 = scmp.eq.s32.totalorder %s23, 1
      %p67 = por %p65, %p66
      %p69 = scmp.ne.s32.totalorder %s52, %s68
      %p70 = scmp.eq.s32.totalorder %s23, 0
      %p71 = por %p69, %p70
      %s73 = sadd.s32 %s72, 1
      %p76 = scmp.eq.s32.totalorder %s17, 1
      %p77 = scmp.ne.s32.totalorder %s72, %s74
      %p78 = scmp.eq.s32.totalorder %s17, 0
      %p79 = por %p77, %p78
      %p80 = scmp.ne.s32.totalorder %s72, %s74
      %p81 = scmp.eq.s32.totalorder %s22, 1
      %p82 = por %p80, %p81
      %p83 = scmp.ne.s32.totalorder %s74, %s75
      %p84 = scmp.eq.s32.totalorder %s22, 0
      %p85 = por %p83, %p84
      %p86 = scmp.ne.s32.totalorder %s74, %s75
      %p87 = scmp.eq.s32.totalorder %s23, 1
      %p88 = por %p86, %p87
      %p90 = scmp.ne.s32.totalorder %s75, %s89
      %p91 = scmp.eq.s32.totalorder %s23, 0
      %p92 = por %p90, %p91
      %s94 = sadd.s32 %s93, 1
      %p97 = scmp.eq.s32.totalorder %s17, 1
      %p98 = scmp.ne.s32.totalorder %s93, %s95
      %p99 = scmp.eq.s32.totalorder %s17, 0
      %p100 = por %p98, %p99
      %p101 = scmp.ne.s32.totalorder %s93, %s95
      %p102 = scmp.eq.s32.totalorder %s22, 1
      %p103 = por %p101, %p102
      %p104 = scmp.ne.s32.totalorder %s95, %s96
      %p105 = scmp.eq.s32.totalorder %s22, 0
      %p106 = por %p104, %p105
      %p107 = scmp.ne.s32.totalorder %s95, %s96
      %p108 = scmp.eq.s32.totalorder %s23, 1
      %p109 = por %p107, %p108
      %p111 = scmp.ne.s32.totalorder %s96, %s110
      %p112 = scmp.eq.s32.totalorder %s23, 0
      %p113 = por %p111, %p112
      %s114 = ssub.s32 %s17, %s24
      %p115 = scmp.eq.s32.totalorder %s114, 0
      %s117 = sadd.s32 %s116, 1
      %s118 = scalar_select %p115, %s116, %s117
      %p121 = pneg %p115
      %p122 = scmp.eq.s32.totalorder %s17, 1
      %p123 = por %p121, %p122
      %p124 = scmp.ne.s32.totalorder %s116, %s119
      %p125 = scmp.eq.s32.totalorder %s17, 0
      %p126 = por %p124, %p125
      %p127 = scmp.ne.s32.totalorder %s116, %s119
      %p128 = scmp.eq.s32.totalorder %s22, 1
      %p129 = por %p127, %p128
      %p130 = scmp.ne.s32.totalorder %s119, %s120
      %p131 = scmp.eq.s32.totalorder %s22, 0
      %p132 = por %p130, %p131
      %p133 = scmp.ne.s32.totalorder %s119, %s120
      %p134 = scmp.eq.s32.totalorder %s23, 1
      %p135 = por %p133, %p134
      %p137 = scmp.ne.s32.totalorder %s120, %s136
      %p138 = scmp.eq.s32.totalorder %s23, 0
      %p139 = por %p137, %p138
      %s140 = ssub.s32 %s17, %s24
      %p141 = scmp.eq.s32.totalorder %s140, 0
      %s143 = sadd.s32 %s142, 1
      %s144 = scalar_select %p141, %s142, %s143
      %p147 = pneg %p141
      %p148 = scmp.eq.s32.totalorder %s17, 1
      %p149 = por %p147, %p148
      %p150 = scmp.ne.s32.totalorder %s142, %s145
      %p151 = scmp.eq.s32.totalorder %s17, 0
      %p152 = por %p150, %p151
      %p153 = scmp.ne.s32.totalorder %s142, %s145
      %p154 = scmp.eq.s32.totalorder %s22, 1
      %p155 = por %p153, %p154
      %p156 = scmp.ne.s32.totalorder %s145, %s146
      %p157 = scmp.eq.s32.totalorder %s22, 0
      %p158 = por %p156, %p157
      %p159 = scmp.ne.s32.totalorder %s145, %s146
      %p160 = scmp.eq.s32.totalorder %s23, 1
      %p161 = por %p159, %p160
      %p163 = scmp.ne.s32.totalorder %s146, %s162
      %p164 = scmp.eq.s32.totalorder %s23, 0
      %p165 = por %p163, %p164
      %s166 = ssub.s32 %s17, %s24
      %p167 = scmp.eq.s32.totalorder %s166, 0
      %s169 = sadd.s32 %s168, 1
      %s170 = scalar_select %p167, %s168, %s169
      %p173 = pneg %p167
      %p174 = scmp.eq.s32.totalorder %s17, 1
      %p175 = por %p173, %p174
      %p176 = scmp.ne.s32.totalorder %s168, %s171
      %p177 = scmp.eq.s32.totalorder %s17, 0
      %p178 = por %p176, %p177
      %p179 = scmp.ne.s32.totalorder %s168, %s171
      %p180 = scmp.eq.s32.totalorder %s22, 1
      %p181 = por %p179, %p180
      %p182 = scmp.ne.s32.totalorder %s171, %s172
      %p183 = scmp.eq.s32.totalorder %s22, 0
      %p184 = por %p182, %p183
      %p185 = scmp.ne.s32.totalorder %s171, %s172
      %p186 = scmp.eq.s32.totalorder %s23, 1
      %p187 = por %p185, %p186
      %p189 = scmp.ne.s32.totalorder %s172, %s188
      %p190 = scmp.eq.s32.totalorder %s23, 0
      %p191 = por %p189, %p190
      %p192 = scmp.le.s32.totalorder 1, %s17
      %p193 = scmp.lt.s32.totalorder %s17, 3
      %p194 = pnand %p192, %p193
      %p195 = pneg %p194
      // Predicated region
      $region9: #{tpu_custom_call.1} parent=5 // pred_check
        _
      $region10: #{tpu_custom_call.1} parent=5 // pred_check_branch
        %197 = sbr.rel (%p194) target = $region12
      $region11: #{tpu_custom_call.1} parent=5 // pred_region
        %s198 = ssub.s32 %s17, 1
        // Predicated region
        $region13: #{tpu_custom_call.1} parent=11 // pred_check
          %p199 = pneg %p38
        $region14: #{tpu_custom_call.1} parent=11 // pred_check_branch
          %201 = sbr.rel (%p199) target = $region16
        $region15: #{tpu_custom_call.1} parent=11 // pred_region
          _
        $region16: #{tpu_custom_call.1} parent=11 // pred_fallthru
          _
        // Predicated region
        $region17: #{tpu_custom_call.1} parent=11 // pred_check
          %p202 = pneg %p85
        $region18: #{tpu_custom_call.1} parent=11 // pred_check_branch
          %204 = sbr.rel (%p202) target = $region20
        $region19: #{tpu_custom_call.1} parent=11 // pred_region
          _
        $region20: #{tpu_custom_call.1} parent=11 // pred_fallthru
          _
        // Predicated region
        $region21: #{tpu_custom_call.1} parent=11 // pred_check
          %p205 = pneg %p106
        $region22: #{tpu_custom_call.1} parent=11 // pred_check_branch
          %207 = sbr.rel (%p205) target = $region24
        $region23: #{tpu_custom_call.1} parent=11 // pred_region
          _
        $region24: #{tpu_custom_call.1} parent=11 // pred_fallthru
          _
      $region12: #{tpu_custom_call.1} parent=5 // pred_fallthru
        _
      %p208 = scmp.lt.s32.totalorder %s17, 2
      // Predicated region
      $region25: #{tpu_custom_call.1} parent=5 // pred_check
        %p209 = pneg %p208
      $region26: #{tpu_custom_call.1} parent=5 // pred_check_branch
        %211 = sbr.rel (%p209) target = $region28
      $region27: #{tpu_custom_call.1} parent=5 // pred_region
        // Predicated region
        $region29: #{tpu_custom_call.1} parent=27 // pred_check
          %p212 = pneg %p58
        $region30: #{tpu_custom_call.1} parent=27 // pred_check_branch
          %214 = sbr.rel (%p212) target = $region32
        $region31: #{tpu_custom_call.1} parent=27 // pred_region
          %p215 = scmp.lt.s32.totalorder %s17, 1
          %s216 = scalar_select %p215, %s17, 1
          %s217 = smul.addr %s216, 2
          %s218 = smul.addr %s217, 8
          %s219 = scalar_lea.vmem %s1, %s218
        $region32: #{tpu_custom_call.1} parent=27 // pred_fallthru
          _
      $region28: #{tpu_custom_call.1} parent=5 // pred_fallthru
        _
      %p220 = scmp.le.s32.totalorder 1, %s17
      %p221 = scmp.lt.s32.totalorder %s17, 3
      %p222 = pnand %p220, %p221
      %p223 = pneg %p222
      // Predicated region
      $region33: #{tpu_custom_call.1} parent=5 // pred_check
        _
      $region34: #{tpu_custom_call.1} parent=5 // pred_check_branch
        %225 = sbr.rel (%p222) target = $region36
      $region35: #{tpu_custom_call.1} parent=5 // pred_region
        %s226 = ssub.s32 %s17, 1
        %p227 = pneg %p38
        %p228 = pneg %p35
        %p229 = scmp.lt.s32.totalorder %s22, 1
        %s230 = scalar_select %p229, %s22, 1
        %s231 = smul.addr %s230, 2
        %s232 = smul.addr %s231, 8
        %s233 = scalar_lea.vmem %s1, %s232
        %p234 = pneg %p64
        %p235 = pneg %p61
        %p236 = pneg %p85
        %p237 = pneg %p82
        %p238 = pneg %p106
        %p239 = pneg %p103
        %p240 = pneg %p132
        %p241 = pneg %p129
        %s242 = sand.u32 %s119, 1
        %s243 = scalar_lea.sflag [#allocation4], %s242
        %s244 = sand.u32 %s119, 1
        %s245 = smul.addr %s244, 16
        %s246 = scalar_lea.vmem [#allocation3], %s245
        %p247 = pneg %p158
        %p248 = pneg %p155
        %p249 = scmp.lt.s32.totalorder %s22, 1
        %s250 = scalar_select %p249, %s22, 1
        %s251 = smul.addr %s250, 2
        %s252 = smul.addr %s251, 8
        %s253 = scalar_lea.vmem %s5, %s252
        %p254 = pneg %p184
        %p255 = pneg %p181
        %p256 = scmp.lt.s32.totalorder %s22, 1
        %s257 = scalar_select %p256, %s22, 1
        %s258 = smul.addr %s257, 2
        %s259 = smul.addr %s258, 8
        %s260 = scalar_lea.vmem %s6, %s259
        %p261 = scmp.lt.s32.totalorder %s22, 1
        %s262 = scalar_select %p261, %s22, 1
        %s263 = smul.addr %s262, 2
        %s264 = smul.addr %s263, 8
        %s265 = scalar_lea.vmem %s1, %s264
        %p266 = scmp.lt.s32.totalorder %s22, 1
        %s267 = scalar_select %p266, %s22, 1
        %s268 = smul.addr %s267, 2
        %s269 = smul.addr %s268, 8
        %s270 = scalar_lea.vmem %s5, %s269
        %p271 = scmp.lt.s32.totalorder %s22, 1
        %s272 = scalar_select %p271, %s22, 1
        %s273 = smul.addr %s272, 2
        %s274 = smul.addr %s273, 8
        %s275 = scalar_lea.vmem %s6, %s274
        %s277 = sld [smem:[#allocation2]]
        %v278 = vld [vmem:[%s2] sm:$0xff]
        %v279 = vld [vmem:[%s2 + $0x8] sm:$0xff]
        %v280 = vld [vmem:[%s2 + $0x10] sm:$0xff]
        %v281 = vld [vmem:[%s2 + $0x18] sm:$0xff]
        %v282 = vld [vmem:[%s3] sm:$0xff]
        %v283 = vld [vmem:[%s3 + $0x8] sm:$0xff]
        %v284 = vld [vmem:[%s3 + $0x10] sm:$0xff]
        %v285 = vld [vmem:[%s3 + $0x18] sm:$0xff]
        %v286 = vlaneseq
        %v287 = vand.u32 %v286, 127
        %vm288 = vcmp.lt.s32.totalorder %v287, 64
        %v289 = vld [vmem:[%s265] sm:$0xff]
        %v290 = vld [vmem:[%s265 + $0x8] sm:$0xff]
        %292 = vset.pattern.permute.xlu0 0
        %293 = vperm.xlu0 %292, %v282
        %v294 = vpop.permute.xlu0 %293
        %297 = vset.pattern.permute.xlu0 0
        %298 = vperm.xlu0 %297, %v283
        %v299 = vpop.permute.xlu0 %298
        %302 = vset.pattern.permute.xlu0 0
        %303 = vperm.xlu0 %302, %v284
        %v304 = vpop.permute.xlu0 %303
        %307 = vset.pattern.permute.xlu0 0
        %308 = vperm.xlu0 %307, %v285
        %v309 = vpop.permute.xlu0 %308
        %vm311 = vcmask 130048
        %v313 = vsel %vm311, %v278, 0
        %v316 = vsel %vm311, %v279, 0
        %v319 = vsel %vm311, %v280, 0
        %v322 = vsel %vm311, %v281, 0
        %324 = vmatprep.subr.mxu0 0.0
        %325 = vmatpush1.msra.mxu0 %v289
        %326 = vmatprep.subr.mxu0 0.0
        %327 = vmatpush1.msra.mxu0 %v290
        %328 = vmatprep.subr.mxu0 0.0
        %329 = vmatpush1.msra.mxu0 0.0
        %330 = vmatprep.subr.mxu0 0.0
        %331 = vmatpush1.msra.mxu0 0.0
        %332 = vmatprep.subr.mxu0 0.0
        %333 = vmatpush1.msra.mxu0 0.0
        %334 = vmatprep.subr.mxu0 0.0
        %335 = vmatpush1.msra.mxu0 0.0
        %336 = vmatprep.subr.mxu0 0.0
        %337 = vmatpush1.msra.mxu0 0.0
        %338 = vmatprep.subr.mxu0 0.0
        %339 = vmatpush1.msra.mxu0 0.0
        %340 = vmatprep.subr.mxu0 0.0
        %341 = vmatpush1.msra.mxu0 0.0
        %342 = vmatprep.subr.mxu0 0.0
        %343 = vmatpush1.msra.mxu0 0.0
        %344 = vmatprep.subr.mxu0 0.0
        %345 = vmatpush1.msra.mxu0 0.0
        %346 = vmatprep.subr.mxu0 0.0
        %347 = vmatpush1.msra.mxu0 0.0
        %348 = vmatprep.subr.mxu0 0.0
        %349 = vmatpush1.msra.mxu0 0.0
        %350 = vmatprep.subr.mxu0 0.0
        %351 = vmatpush1.msra.mxu0 0.0
        %352 = vmatprep.subr.mxu0 0.0
        %353 = vmatpush1.msra.mxu0 0.0
        %354 = vmatprep.subr.mxu0 0.0
        %355 = vmatpush1.msra.mxu0 0.0
        %356 = vmatprep.subr.mxu0 0.0
        %357 = vmatpush1.msra.mxu0 0.0
        %358 = vmatprep.subr.mxu0 0.0
        %359 = vmatpush1.msra.mxu0 0.0
        %360 = vmatprep.subr.mxu0 0.0
        %361 = vmatpush1.msra.mxu0 0.0
        %362 = vmatprep.subr.mxu0 0.0
        %363 = vmatpush1.msra.mxu0 0.0
        %364 = vmatprep.subr.mxu0 0.0
        %365 = vmatpush1.msra.mxu0 0.0
        %366 = vmatprep.subr.mxu0 0.0
        %367 = vmatpush1.msra.mxu0 0.0
        %368 = vmatprep.subr.mxu0 0.0
        %369 = vmatpush1.msra.mxu0 0.0
        %370 = vmatprep.subr.mxu0 0.0
        %371 = vmatpush1.msra.mxu0 0.0
        %372 = vmatprep.subr.mxu0 0.0
        %373 = vmatpush1.msra.mxu0 0.0
        %374 = vmatprep.subr.mxu0 0.0
        %375 = vmatpush1.msra.mxu0 0.0
        %376 = vmatprep.subr.mxu0 0.0
        %377 = vmatpush1.msra.mxu0 0.0
        %378 = vmatprep.subr.mxu0 0.0
        %379 = vmatpush1.msra.mxu0 0.0
        %380 = vmatprep.subr.mxu0 0.0
        %381 = vmatpush1.msra.mxu0 0.0
        %382 = vmatprep.subr.mxu0 0.0
        %383 = vmatpush1.msra.mxu0 0.0
        %384 = vmatprep.subr.mxu0 0.0
        %385 = vmatpush1.msra.mxu0 0.0
        %386 = vmatprep.subr.mxu0 0.0
        %387 = vmatpush1.msra.mxu0 0.0
        %388 = vmatprep.mubr.f32.mxu0 0.0
        %389 = vmatmul.mubr.f32.gmra.mrb[0].mxu0 %v313
        %v390 = vpop.f32.mrb[0].mxu0
        %v391 = vadd.f32 %v294, %v390
        %v392 = vpop.f32.mrb[0].mxu0
        %393 = vmatprep.mubr.f32.mxu0 0.0
        %394 = vmatmul.mubr.f32.gmra.mrb[0].mxu0 %v316
        %v395 = vpop.f32.mrb[0].mxu0
        %v396 = vadd.f32 %v299, %v395
        %v397 = vpop.f32.mrb[0].mxu0
        %398 = vmatprep.mubr.f32.mxu0 0.0
        %399 = vmatmul.mubr.f32.gmra.mrb[0].mxu0 %v319
        %v400 = vpop.f32.mrb[0].mxu0
        %v401 = vadd.f32 %v304, %v400
        %v402 = vpop.f32.mrb[0].mxu0
        %403 = vmatprep.mubr.f32.mxu0 0.0
        %404 = vmatmul.mubr.f32.gmra.mrb[0].mxu0 %v322
        %v405 = vpop.f32.mrb[0].mxu0
        %v406 = vadd.f32 %v309, %v405
        %v407 = vpop.f32.mrb[0].mxu0
        %408 = vdwg.mxu0
        %v409 = vpack.c.bf16 %v391, %v391
        %v410 = vpack.c.bf16 %v396, %v396
        %411 = vxpose.xlu0.c.b16.start [1/8] %v409, 128
        %412 = vxpose.xlu0.c.b16.cont [2/8] 0, 128
        %413 = vxpose.xlu0.c.b16.cont [3/8] 0, 128
        %414 = vxpose.xlu0.c.b16.cont [4/8] 0, 128
        %415 = vxpose.xlu0.c.b16.cont [5/8] 0, 128
        %416 = vxpose.xlu0.c.b16.cont [6/8] 0, 128
        %417 = vxpose.xlu0.c.b16.cont [7/8] 0, 128
        %418 = vxpose.xlu0.c.b16.end [8/8] 0, 128
        %v419 = vpop.trf.xlu0
        %v420 = vpop.trf.xlu0
        %v421 = vpop.trf.xlu0
        %v422 = vpop.trf.xlu0
        %v423 = vpop.trf.xlu0
        %v424 = vpop.trf.xlu0
        %v425 = vpop.trf.xlu0
        %v426 = vpop.trf.xlu0
        %vm427 = vcmask 64512
        %v429 = vsel %vm427, %v419, 0
        %v432 = vsel %vm427, %v420, 0
        %v435 = vsel %vm427, %v421, 0
        %v438 = vsel %vm427, %v422, 0
        %v441 = vsel %vm427, %v423, 0
        %v444 = vsel %vm427, %v424, 0
        %v447 = vsel %vm427, %v425, 0
        %v450 = vsel %vm427, %v426, 0
        %vm452 = vcmask 1043456
        %v454 = vsel %vm452, %v410, 0
        %456 = vmatprep.subr.bf16.mxu0 0
        %457 = vmatpush1.bf16.msra.mxu0 %v454
        %458 = vmatprep.subr.bf16.mxu0 0
        %459 = vmatpush1.bf16.msra.mxu0 0
        %460 = vmatprep.subr.bf16.mxu0 0
        %461 = vmatpush1.bf16.msra.mxu0 0
        %462 = vmatprep.subr.bf16.mxu0 0
        %463 = vmatpush1.bf16.msra.mxu0 0
        %464 = vmatprep.subr.bf16.mxu0 0
        %465 = vmatpush1.bf16.msra.mxu0 0
        %466 = vmatprep.subr.bf16.mxu0 0
        %467 = vmatpush1.bf16.msra.mxu0 0
        %468 = vmatprep.subr.bf16.mxu0 0
        %469 = vmatpush1.bf16.msra.mxu0 0
        %470 = vmatprep.subr.bf16.mxu0 0
        %471 = vmatpush1.bf16.msra.mxu0 0
        %472 = vmatprep.subr.bf16.mxu0 0
        %473 = vmatpush1.bf16.msra.mxu0 0
        %474 = vmatprep.subr.bf16.mxu0 0
        %475 = vmatpush1.bf16.msra.mxu0 0
        %476 = vmatprep.subr.bf16.mxu0 0
        %477 = vmatpush1.bf16.msra.mxu0 0
        %478 = vmatprep.subr.bf16.mxu0 0
        %479 = vmatpush1.bf16.msra.mxu0 0
        %480 = vmatprep.subr.bf16.mxu0 0
        %481 = vmatpush1.bf16.msra.mxu0 0
        %482 = vmatprep.subr.bf16.mxu0 0
        %483 = vmatpush1.bf16.msra.mxu0 0
        %484 = vmatprep.subr.bf16.mxu0 0
        %485 = vmatpush1.bf16.msra.mxu0 0
        %486 = vmatprep.subr.bf16.mxu0 0
        %487 = vmatpush1.bf16.msra.mxu0 0
        %488 = vmatprep.mubr.bf16.mxu0 0
        %489 = vmatmul.mubr.bf16.gmra.mrb[0].mxu0 %v429
        %v490 = vpop.f32.mrb[0].mxu0
        %v491 = vadd.f32 0.0, %v490
        %v492 = vpop.f32.mrb[0].mxu0
        %v493 = vpop.f32.mrb[0].mxu0
        %v494 = vadd.f32 0.0, %v493
        %v495 = vpop.f32.mrb[0].mxu0
        %496 = vmatprep.mubr.bf16.mxu0 0
        %497 = vmatmul.mubr.bf16.gmra.mrb[0].mxu0 %v432
        %v498 = vpop.f32.mrb[0].mxu0
        %v499 = vadd.f32 0.0, %v498
        %v500 = vpop.f32.mrb[0].mxu0
        %v501 = vpop.f32.mrb[0].mxu0
        %v502 = vadd.f32 0.0, %v501
        %v503 = vpop.f32.mrb[0].mxu0
        %504 = vmatprep.mubr.bf16.mxu0 0
        %505 = vmatmul.mubr.bf16.gmra.mrb[0].mxu0 %v435
        %v506 = vpop.f32.mrb[0].mxu0
        %v507 = vadd.f32 0.0, %v506
        %v508 = vpop.f32.mrb[0].mxu0
        %v509 = vpop.f32.mrb[0].mxu0
        %v510 = vadd.f32 0.0, %v509
        %v511 = vpop.f32.mrb[0].mxu0
        %512 = vmatprep.mubr.bf16.mxu0 0
        %513 = vmatmul.mubr.bf16.gmra.mrb[0].mxu0 %v438
        %v514 = vpop.f32.mrb[0].mxu0
        %v515 = vadd.f32 0.0, %v514
        %v516 = vpop.f32.mrb[0].mxu0
        %v517 = vpop.f32.mrb[0].mxu0
        %v518 = vadd.f32 0.0, %v517
        %v519 = vpop.f32.mrb[0].mxu0
        %520 = vmatprep.mubr.bf16.mxu0 0
        %521 = vmatmul.mubr.bf16.gmra.mrb[0].mxu0 %v441
        %v522 = vpop.f32.mrb[0].mxu0
        %v523 = vadd.f32 0.0, %v522
        %v524 = vpop.f32.mrb[0].mxu0
        %v525 = vpop.f32.mrb[0].mxu0
        %v526 = vadd.f32 0.0, %v525
        %v527 = vpop.f32.mrb[0].mxu0
        %528 = vmatprep.mubr.bf16.mxu0 0
        %529 = vmatmul.mubr.bf16.gmra.mrb[0].mxu0 %v444
        %v530 = vpop.f32.mrb[0].mxu0
        %v531 = vadd.f32 0.0, %v530
        %v532 = vpop.f32.mrb[0].mxu0
        %v533 = vpop.f32.mrb[0].mxu0
        %v534 = vadd.f32 0.0, %v533
        %v535 = vpop.f32.mrb[0].mxu0
        %536 = vmatprep.mubr.bf16.mxu0 0
        %537 = vmatmul.mubr.bf16.gmra.mrb[0].mxu0 %v447
        %v538 = vpop.f32.mrb[0].mxu0
        %v539 = vadd.f32 0.0, %v538
        %v540 = vpop.f32.mrb[0].mxu0
        %v541 = vpop.f32.mrb[0].mxu0
        %v542 = vadd.f32 0.0, %v541
        %v543 = vpop.f32.mrb[0].mxu0
        %544 = vmatprep.mubr.bf16.mxu0 0
        %545 = vmatmul.mubr.bf16.gmra.mrb[0].mxu0 %v450
        %v546 = vpop.f32.mrb[0].mxu0
        %v547 = vadd.f32 0.0, %v546
        %v548 = vpop.f32.mrb[0].mxu0
        %v549 = vpop.f32.mrb[0].mxu0
        %v550 = vadd.f32 0.0, %v549
        %v551 = vpop.f32.mrb[0].mxu0
        %552 = vdwg.mxu0
        %v553 = vsel %vm288, 1, 0
        %vm554 = vcmp.eq.s32.totalorder %v553, 1
        %v555 = vsel %vm554, %v491, -1e+30
        %v556 = vsel %vm554, %v494, -1e+30
        %v557 = vsel %vm554, %v499, -1e+30
        %v558 = vsel %vm554, %v502, -1e+30
        %v559 = vsel %vm554, %v507, -1e+30
        %v560 = vsel %vm554, %v510, -1e+30
        %v561 = vsel %vm554, %v515, -1e+30
        %v562 = vsel %vm554, %v518, -1e+30
        %v563 = vsel %vm554, %v523, -1e+30
        %v564 = vsel %vm554, %v526, -1e+30
        %v565 = vsel %vm554, %v531, -1e+30
        %v566 = vsel %vm554, %v534, -1e+30
        %v567 = vsel %vm554, %v539, -1e+30
        %v568 = vsel %vm554, %v542, -1e+30
        %v569 = vsel %vm554, %v547, -1e+30
        %v570 = vsel %vm554, %v550, -1e+30
        %571 = vmax.xlane.f32.xlu0 %v555
        %v572 = vpop.xlane.xlu0 %571
        %573 = vmax.xlane.f32.xlu0 %v556
        %v574 = vpop.xlane.xlu0 %573
        %575 = vmax.xlane.f32.xlu0 %v557
        %v576 = vpop.xlane.xlu0 %575
        %577 = vmax.xlane.f32.xlu0 %v558
        %v578 = vpop.xlane.xlu0 %577
        %579 = vmax.xlane.f32.xlu0 %v559
        %v580 = vpop.xlane.xlu0 %579
        %581 = vmax.xlane.f32.xlu0 %v560
        %v582 = vpop.xlane.xlu0 %581
        %583 = vmax.xlane.f32.xlu0 %v561
        %v584 = vpop.xlane.xlu0 %583
        %585 = vmax.xlane.f32.xlu0 %v562
        %v586 = vpop.xlane.xlu0 %585
        %587 = vmax.xlane.f32.xlu0 %v563
        %v588 = vpop.xlane.xlu0 %587
        %589 = vmax.xlane.f32.xlu0 %v564
        %v590 = vpop.xlane.xlu0 %589
        %591 = vmax.xlane.f32.xlu0 %v565
        %v592 = vpop.xlane.xlu0 %591
        %593 = vmax.xlane.f32.xlu0 %v566
        %v594 = vpop.xlane.xlu0 %593
        %595 = vmax.xlane.f32.xlu0 %v567
        %v596 = vpop.xlane.xlu0 %595
        %597 = vmax.xlane.f32.xlu0 %v568
        %v598 = vpop.xlane.xlu0 %597
        %599 = vmax.xlane.f32.xlu0 %v569
        %v600 = vpop.xlane.xlu0 %599
        %601 = vmax.xlane.f32.xlu0 %v570
        %v602 = vpop.xlane.xlu0 %601
        %v603 = vsub.f32 %v555, %v572
        %v604 = vsub.f32 %v556, %v574
        %v605 = vsub.f32 %v557, %v576
        %v606 = vsub.f32 %v558, %v578
        %v607 = vsub.f32 %v559, %v580
        %v608 = vsub.f32 %v560, %v582
        %v609 = vsub.f32 %v561, %v584
        %v610 = vsub.f32 %v562, %v586
        %v611 = vsub.f32 %v563, %v588
        %v612 = vsub.f32 %v564, %v590
        %v613 = vsub.f32 %v565, %v592
        %v614 = vsub.f32 %v566, %v594
        %v615 = vsub.f32 %v567, %v596
        %v616 = vsub.f32 %v568, %v598
        %v617 = vsub.f32 %v569, %v600
        %v618 = vsub.f32 %v570, %v602
        %v619 = vmul.f32 %v603, 1.442695
        %v620 = vpow.pop %v619
        %v621 = vmul.f32 %v604, 1.442695
        %v622 = vpow.pop %v621
        %v623 = vmul.f32 %v605, 1.442695
        %v624 = vpow.pop %v623
        %v625 = vmul.f32 %v606, 1.442695
        %v626 = vpow.pop %v625
        %v627 = vmul.f32 %v607, 1.442695
        %v628 = vpow.pop %v627
        %v629 = vmul.f32 %v608, 1.442695
        %v630 = vpow.pop %v629
        %v631 = vmul.f32 %v609, 1.442695
        %v632 = vpow.pop %v631
        %v633 = vmul.f32 %v610, 1.442695
        %v634 = vpow.pop %v633
        %v635 = vmul.f32 %v611, 1.442695
        %v636 = vpow.pop %v635
        %v637 = vmul.f32 %v612, 1.442695
        %v638 = vpow.pop %v637
        %v639 = vmul.f32 %v613, 1.442695
        %v640 = vpow.pop %v639
        %v641 = vmul.f32 %v614, 1.442695
        %v642 = vpow.pop %v641
        %v643 = vmul.f32 %v615, 1.442695
        %v644 = vpow.pop %v643
        %v645 = vmul.f32 %v616, 1.442695
        %v646 = vpow.pop %v645
        %v647 = vmul.f32 %v617, 1.442695
        %v648 = vpow.pop %v647
        %v649 = vmul.f32 %v618, 1.442695
        %v650 = vpow.pop %v649
        %651 = vadd.xlane.f32.xlu0 %v620
        %v652 = vpop.xlane.xlu0 %651
        %653 = vadd.xlane.f32.xlu0 %v622
        %v654 = vpop.xlane.xlu0 %653
        %655 = vadd.xlane.f32.xlu0 %v624
        %v656 = vpop.xlane.xlu0 %655
        %657 = vadd.xlane.f32.xlu0 %v626
        %v658 = vpop.xlane.xlu0 %657
        %659 = vadd.xlane.f32.xlu0 %v628
        %v660 = vpop.xlane.xlu0 %659
        %661 = vadd.xlane.f32.xlu0 %v630
        %v662 = vpop.xlane.xlu0 %661
        %663 = vadd.xlane.f32.xlu0 %v632
        %v664 = vpop.xlane.xlu0 %663
        %665 = vadd.xlane.f32.xlu0 %v634
        %v666 = vpop.xlane.xlu0 %665
        %667 = vadd.xlane.f32.xlu0 %v636
        %v668 = vpop.xlane.xlu0 %667
        %669 = vadd.xlane.f32.xlu0 %v638
        %v670 = vpop.xlane.xlu0 %669
        %671 = vadd.xlane.f32.xlu0 %v640
        %v672 = vpop.xlane.xlu0 %671
        %673 = vadd.xlane.f32.xlu0 %v642
        %v674 = vpop.xlane.xlu0 %673
        %675 = vadd.xlane.f32.xlu0 %v644
        %v676 = vpop.xlane.xlu0 %675
        %677 = vadd.xlane.f32.xlu0 %v646
        %v678 = vpop.xlane.xlu0 %677
        %679 = vadd.xlane.f32.xlu0 %v648
        %v680 = vpop.xlane.xlu0 %679
        %681 = vadd.xlane.f32.xlu0 %v650
        %v682 = vpop.xlane.xlu0 %681
        %v683 = vrcp.pop %v652
        %v684 = vrcp.pop %v654
        %v685 = vrcp.pop %v656
        %v686 = vrcp.pop %v658
        %v687 = vrcp.pop %v660
        %v688 = vrcp.pop %v662
        %v689 = vrcp.pop %v664
        %v690 = vrcp.pop %v666
        %v691 = vrcp.pop %v668
        %v692 = vrcp.pop %v670
        %v693 = vrcp.pop %v672
        %v694 = vrcp.pop %v674
        %v695 = vrcp.pop %v676
        %v696 = vrcp.pop %v678
        %v697 = vrcp.pop %v680
        %v698 = vrcp.pop %v682
        %v699 = vmul.f32 %v620, %v683
        %v700 = vmul.f32 %v622, %v684
        %v701 = vmul.f32 %v624, %v685
        %v702 = vmul.f32 %v626, %v686
        %v703 = vmul.f32 %v628, %v687
        %v704 = vmul.f32 %v630, %v688
        %v705 = vmul.f32 %v632, %v689
        %v706 = vmul.f32 %v634, %v690
        %v707 = vmul.f32 %v636, %v691
        %v708 = vmul.f32 %v638, %v692
        %v709 = vmul.f32 %v640, %v693
        %v710 = vmul.f32 %v642, %v694
        %v711 = vmul.f32 %v644, %v695
        %v712 = vmul.f32 %v646, %v696
        %v713 = vmul.f32 %v648, %v697
        %v714 = vmul.f32 %v650, %v698
        %v715 = vpack.c.bf16 %v406, %v401
        %v716 = vpack.c.bf16 %v700, %v699
        %v717 = vpack.c.bf16 %v702, %v701
        %v718 = vpack.c.bf16 %v704, %v703
        %v719 = vpack.c.bf16 %v706, %v705
        %v720 = vpack.c.bf16 %v708, %v707
        %v721 = vpack.c.bf16 %v710, %v709
        %v722 = vpack.c.bf16 %v712, %v711
        %v723 = vpack.c.bf16 %v714, %v713
        %724 = vmatprep.subr.bf16.mxu0 0
        %725 = vmatpush1.bf16.xpose.msra.mxu0 %v716
        %726 = vmatprep.subr.bf16.mxu0 0
        %727 = vmatpush1.bf16.xpose.msra.mxu0 %v717
        %728 = vmatprep.subr.bf16.mxu0 0
        %729 = vmatpush1.bf16.xpose.msra.mxu0 %v718
        %730 = vmatprep.subr.bf16.mxu0 0
        %731 = vmatpush1.bf16.xpose.msra.mxu0 %v719
        %732 = vmatprep.subr.bf16.mxu0 0
        %733 = vmatpush1.bf16.xpose.msra.mxu0 %v720
        %734 = vmatprep.subr.bf16.mxu0 0
        %735 = vmatpush1.bf16.xpose.msra.mxu0 %v721
        %736 = vmatprep.subr.bf16.mxu0 0
        %737 = vmatpush1.bf16.xpose.msra.mxu0 %v722
        %738 = vmatprep.subr.bf16.mxu0 0
        %739 = vmatpush1.bf16.xpose.msra.mxu0 %v723
        %740 = vmatprep.subr.bf16.mxu0 0
        %741 = vmatpush1.bf16.xpose.msra.mxu0 0
        %742 = vmatprep.subr.bf16.mxu0 0
        %743 = vmatpush1.bf16.xpose.msra.mxu0 0
        %744 = vmatprep.subr.bf16.mxu0 0
        %745 = vmatpush1.bf16.xpose.msra.mxu0 0
        %746 = vmatprep.subr.bf16.mxu0 0
        %747 = vmatpush1.bf16.xpose.msra.mxu0 0
        %748 = vmatprep.subr.bf16.mxu0 0
        %749 = vmatpush1.bf16.xpose.msra.mxu0 0
        %750 = vmatprep.subr.bf16.mxu0 0
        %751 = vmatpush1.bf16.xpose.msra.mxu0 0
        %752 = vmatprep.subr.bf16.mxu0 0
        %753 = vmatpush1.bf16.xpose.msra.mxu0 0
        %754 = vmatprep.subr.bf16.mxu0 0
        %755 = vmatpush1.bf16.xpose.msra.mxu0 0
        %756 = vmatprep.mubr.bf16.mxu0 0
        %757 = vmatmul.mubr.bf16.gmra.mrb[0].mxu0 %v715
        %v758 = vpop.f32.mrb[0].mxu0
        %v759 = vadd.f32 0.0, %v758
        %v760 = vpop.f32.mrb[0].mxu0
        %v761 = vpop.f32.mrb[0].mxu0
        %v762 = vadd.f32 0.0, %v761
        %v763 = vpop.f32.mrb[0].mxu0
        %764 = vdwg.mxu0
        %v765 = vstv %s277
        %v766 = vmul.f32 %v765, %v759
        %v767 = vmul.f32 %v765, %v762
        %v768 = vadd.f32 %v766, %v289
        %v769 = vadd.f32 %v767, %v290
        %v770 = vsel %vm554, %v768, 0.0
        %v771 = vsel %vm554, %v769, 0.0
        %772 = vst [vmem:[%s246] sm:$0xff] %v770
        %773 = vst [vmem:[%s246 + $0x8] sm:$0xff] %v771
        %774 = vadd.xlane.f32.xlu0 %v770
        %v775 = vpop.xlane.xlu0 %774
        %776 = vadd.xlane.f32.xlu0 %v771
        %v777 = vpop.xlane.xlu0 %776
        %v778 = vadd.f32 %v775, 0.0
        %v779 = vadd.f32 %v777, 0.0
        %v780 = vmul.f32 %v770, %v770
        %v781 = vmul.f32 %v771, %v771
        %782 = vadd.xlane.f32.xlu0 %v780
        %v783 = vpop.xlane.xlu0 %782
        %784 = vadd.xlane.f32.xlu0 %v781
        %v785 = vpop.xlane.xlu0 %784
        %v786 = vadd.f32 %v783, 0.0
        %v787 = vadd.f32 %v785, 0.0
        %vm788 = vcmask 7168
        %789 = vst.msk [vmem:[%s270] sm:$0xff] %vm788, %v778
        %790 = vst.msk [vmem:[%s270 + $0x8] sm:$0xff] %vm788, %v779
        %791 = vst.msk [vmem:[%s275] sm:$0xff] %vm788, %v786
        %792 = vst.msk [vmem:[%s275 + $0x8] sm:$0xff] %vm788, %v787
        %s793 = sand.u32 %s119, 1
        %s794 = scalar_lea.sflag [#allocation4], %s793
        %s795 = sand.u32 %s119, 1
        %s796 = smul.addr %s795, 16
        %s797 = scalar_lea.vmem [#allocation3], %s796
        %p798 = scmp.lt.s32.totalorder %s22, 1
        %s799 = scalar_select %p798, %s22, 1
        %s800 = smul.addr %s799, 2
        %s801 = smul.addr %s800, 8
        %s802 = scalar_lea.vmem %s5, %s801
        %p803 = scmp.lt.s32.totalorder %s22, 1
        %s804 = scalar_select %p803, %s22, 1
        %s805 = smul.addr %s804, 2
        %s806 = smul.addr %s805, 8
        %s807 = scalar_lea.vmem %s6, %s806
        // Predicated region
        $region37: #{tpu_custom_call.1} parent=35 // pred_check
          %p808 = pneg %p129
        $region38: #{tpu_custom_call.1} parent=35 // pred_check_branch
          %810 = sbr.rel (%p808) target = $region40
        $region39: #{tpu_custom_call.1} parent=35 // pred_region
          %s812 = ssub.s32 256, 256
          %813 = vsyncadd %s794, %s812
          %s814 = smul.addr %s22, 2
          %s815 = smul.addr %s814, 128
          %s816 = scalar_lea.hbm %s4, %s815
          %s817 = sshll.u32 %s797, 4
          %s818 = int_to_ptr.vmem [resolvable:$true] %s817
          %823 = dma.vmem_to_hbm [thread:$0]  %s818, 256, %s816, %s794, 128, 128, 8
        $region40: #{tpu_custom_call.1} parent=35 // pred_fallthru
          _
        // Predicated region
        $region41: #{tpu_custom_call.1} parent=35 // pred_check
          %p824 = pneg %p155
        $region42: #{tpu_custom_call.1} parent=35 // pred_check_branch
          %826 = sbr.rel (%p824) target = $region44
        $region43: #{tpu_custom_call.1} parent=35 // pred_region
          _
        $region44: #{tpu_custom_call.1} parent=35 // pred_fallthru
          _
        // Predicated region
        $region45: #{tpu_custom_call.1} parent=35 // pred_check
          %p827 = pneg %p181
        $region46: #{tpu_custom_call.1} parent=35 // pred_check_branch
          %829 = sbr.rel (%p827) target = $region48
        $region47: #{tpu_custom_call.1} parent=35 // pred_region
          _
        $region48: #{tpu_custom_call.1} parent=35 // pred_fallthru
          _
      $region36: #{tpu_custom_call.1} parent=5 // pred_fallthru
        _
      %p830 = scmp.le.s32.totalorder 2, %s17
      // Predicated region
      $region49: #{tpu_custom_call.1} parent=5 // pred_check
        %p831 = pneg %p830
      $region50: #{tpu_custom_call.1} parent=5 // pred_check_branch
        %833 = sbr.rel (%p831) target = $region52
      $region51: #{tpu_custom_call.1} parent=5 // pred_region
        %s834 = ssub.s32 %s17, 2
        // Predicated region
        $region53: #{tpu_custom_call.1} parent=51 // pred_check
          %p835 = pneg %p135
        $region54: #{tpu_custom_call.1} parent=51 // pred_check_branch
          %837 = sbr.rel (%p835) target = $region56
        $region55: #{tpu_custom_call.1} parent=51 // pred_region
          %s838 = sand.u32 %s120, 1
          %s839 = scalar_lea.sflag [#allocation4], %s838
          %s840 = sand.u32 %s120, 1
          %s841 = smul.addr %s840, 16
          %s842 = scalar_lea.vmem [#allocation3], %s841
          %843 = dma.done %s839, 256
        $region56: #{tpu_custom_call.1} parent=51 // pred_fallthru
          _
        // Predicated region
        $region57: #{tpu_custom_call.1} parent=51 // pred_check
          %p844 = pneg %p161
        $region58: #{tpu_custom_call.1} parent=51 // pred_check_branch
          %846 = sbr.rel (%p844) target = $region60
        $region59: #{tpu_custom_call.1} parent=51 // pred_region
          %p847 = scmp.lt.s32.totalorder %s23, 1
          %s848 = scalar_select %p847, %s23, 1
          %s849 = smul.addr %s848, 2
          %s850 = smul.addr %s849, 8
          %s851 = scalar_lea.vmem %s5, %s850
        $region60: #{tpu_custom_call.1} parent=51 // pred_fallthru
          _
        // Predicated region
        $region61: #{tpu_custom_call.1} parent=51 // pred_check
          %p852 = pneg %p187
        $region62: #{tpu_custom_call.1} parent=51 // pred_check_branch
          %854 = sbr.rel (%p852) target = $region64
        $region63: #{tpu_custom_call.1} parent=51 // pred_region
          %p855 = scmp.lt.s32.totalorder %s23, 1
          %s856 = scalar_select %p855, %s23, 1
          %s857 = smul.addr %s856, 2
          %s858 = smul.addr %s857, 8
          %s859 = scalar_lea.vmem %s6, %s858
        $region64: #{tpu_custom_call.1} parent=51 // pred_fallthru
          _
      $region52: #{tpu_custom_call.1} parent=5 // pred_fallthru
        _
    $region6: #{tpu_custom_call.1} parent=1 // loop_footer
      %s21 = sadd.s32 1, %s17
    $region7: #{tpu_custom_call.1} parent=1 // loop_footer_branch
      %16 = sbr.rel target = $region3
    $region8: #{tpu_custom_call.1} parent=1 // loop_exit
      _
    %860 = vsyncpa [#allocation4], 1
    %s861 = scalar_lea.sflag [#allocation4], 1
    %862 = vsyncpa %s861, 1

</llo_original>
